<compile_context>
chip_gen: v6e
topology: v6e:2x2x1
jax: 0.10.0
libtpu: 0.0.40
codegen_flags: <defaults>
</compile_context>

<pallas_src>
import jax
import jax.numpy as jnp
from jax.experimental import pallas as pl
from jax.experimental.pallas import tpu as pltpu


def hockeynet_kernel(x_ref, w1_ref, b1_ref, w2_ref, b2_ref, w3_ref, b3_ref,
                     o_ref):
    # fc1 + ReLU (MXU matmul, f32 accumulation; epilogue in f32)
    h1 = jnp.dot(x_ref[...], w1_ref[...], preferred_element_type=jnp.float32)
    h1 = jnp.maximum(h1 + b1_ref[...], 0.0)

    # dropout(p=0.2): inference-mode identity (PyTorch eval semantics).
    # TODO(synk): training-mode dropout would need pltpu.prng_seed mixed with
    #             pl.program_id(0) + pltpu.stateful_bernoulli and 1/(1-p).

    # fc2 + ReLU
    h2 = jnp.dot(h1.astype(w2_ref.dtype), w2_ref[...],
                 preferred_element_type=jnp.float32)
    h2 = jnp.maximum(h2 + b2_ref[...], 0.0)

    # fc3 (block-diagonal packed: [tbp, pack*32] @ [pack*32, pack])
    out = jnp.dot(h2.astype(w3_ref.dtype), w3_ref[...],
                  preferred_element_type=jnp.float32) + b3_ref[...]
    o_ref[...] = out.astype(o_ref.dtype)


def _block_diag(w, k):
    """[fin, fout] -> [k*fin, k*fout] with k copies of w on the diagonal."""
    return jnp.kron(jnp.eye(k, dtype=w.dtype), w)


def hockeynet_forward(x, params, *, block_b=8192, pack=4):
    """Fused HockeyNet forward.

    x: [B, D]; pass bf16 x for a bf16 HBM stream (accumulation stays f32).
    Returns [B, 1] float32.
    """
    w1, b1, w2, b2, w3, b3 = params
    B, D = x.shape

    B_main = (B // pack) * pack
    outs = []

    if B_main > 0:
        # --- pack `pack` rows into the lane dimension --------------------
        # Row-major [B_main, D] -> [B_main//pack, pack*D] is layout-preserving
        # (no copy).  When B % pack != 0 the x[:B_main] slice costs one copy;
        # the common divisible case is copy-free.
        x_main = x if B_main == B else x[:B_main]
        Bp = B_main // pack
        x_p = x_main.reshape(Bp, pack * D)

        stream_dt = x.dtype
        # Tiny (<1 MiB) packed weights, VMEM-resident across all grid steps.
        # (Under jit these are constant-folded / hoisted.)
        w1_p = _block_diag(w1, pack).astype(stream_dt)
        w2_p = _block_diag(w2, pack).astype(stream_dt)
        w3_p = _block_diag(w3, pack).astype(stream_dt)
        b1_p = jnp.tile(b1.astype(jnp.float32), (1, pack))
        b2_p = jnp.tile(b2.astype(jnp.float32), (1, pack))
        b3_p = jnp.tile(b3.astype(jnp.float32), (1, pack))

        # --- batch tile (in packed rows) ----------------------------------
        tbp = max(block_b // pack, 8)
        if Bp <= tbp:
            tbp = Bp                      # single block == full array dims
        else:
            tbp = (tbp // 8) * 8          # keep sublane dim a multiple of 8
        grid = (pl.cdiv(Bp, tbp),)        # partial last block handled by Pallas

        def resident(a):
            # Constant index_map -> same block every step -> stays
            # VMEM-resident, no per-step re-DMA.
            return pl.BlockSpec(a.shape, lambda i: (0, 0))

        itemsize = jnp.dtype(stream_dt).itemsize
        flops = 2 * Bp * ((pack * D) * (pack * 64)
                          + (pack * 64) * (pack * 32)
                          + (pack * 32) * pack)
        bytes_accessed = (x_p.size * itemsize + B_main * 4
                          + (w1_p.size + w2_p.size + w3_p.size) * itemsize
                          + (b1_p.size + b2_p.size + b3_p.size) * 4)

        out_p = pl.pallas_call(
            hockeynet_kernel,
            out_shape=jax.ShapeDtypeStruct((Bp, pack), jnp.float32),
            grid=grid,
            in_specs=[
                pl.BlockSpec((tbp, pack * D), lambda i: (i, 0)),  # streamed x
                resident(w1_p), resident(b1_p),
                resident(w2_p), resident(b2_p),
                resident(w3_p), resident(b3_p),
            ],
            out_specs=pl.BlockSpec((tbp, pack), lambda i: (i, 0)),
            compiler_params=pltpu.CompilerParams(
                dimension_semantics=("parallel",),          # 2 TCs on v7x
                # Headroom for large tiles; 48 MiB is safe on v5e/v6e (128 MiB
                # physical) and within the v7x 64 MiB-per-TC budget.
                vmem_limit_bytes=48 * 1024 * 1024),
            cost_estimate=pl.CostEstimate(
                flops=flops, transcendentals=0,
                bytes_accessed=bytes_accessed),
        )(x_p, w1_p, b1_p, w2_p, b2_p, w3_p, b3_p)

        outs.append(out_p.reshape(B_main, 1))

    if B_main < B:
        # < pack leftover rows: trivial pure-JAX epilogue (negligible cost).
        xr = x[B_main:].astype(jnp.float32)
        h1 = jnp.maximum(xr @ w1.astype(jnp.float32) + b1, 0.0)
        h2 = jnp.maximum(h1 @ w2.astype(jnp.float32) + b2, 0.0)
        outs.append(h2 @ w3.astype(jnp.float32) + b3)

    return outs[0] if len(outs) == 1 else jnp.concatenate(outs, axis=0)


def init_params(key, input_size):
    """Deterministic init matching nn.Linear shapes (uniform +-1/sqrt(fan_in))."""
    ks = jax.random.split(key, 6)

    def linear(kw, kb, fan_in, fan_out):
        bound = 1.0 / jnp.sqrt(fan_in)
        w = jax.random.uniform(kw, (fan_in, fan_out), jnp.float32,
                               -bound, bound)
        b = jax.random.uniform(kb, (1, fan_out), jnp.float32, -bound, bound)
        return w, b

    w1, b1 = linear(ks[0], ks[1], input_size, 64)
    w2, b2 = linear(ks[2], ks[3], 64, 32)
    w3, b3 = linear(ks[4], ks[5], 32, 1)
    return (w1, b1, w2, b2, w3, b3)


def reference_forward(x, params):
    w1, b1, w2, b2, w3, b3 = params
    h1 = jnp.maximum(x @ w1 + b1, 0.0)
    h2 = jnp.maximum(h1 @ w2 + b2, 0.0)
    return h2 @ w3 + b3


if __name__ == "__main__":
    key = jax.random.PRNGKey(0)
    k_p, k_x1, k_x2 = jax.random.split(key, 3)

    input_size = 32
    params = init_params(k_p, input_size)

    # Small case: single packed tile, grid=(1,).
    x_small = jax.random.normal(k_x1, (8, input_size), jnp.float32)
    out_small = jax.block_until_ready(hockeynet_forward(x_small, params))
    ref_small = reference_forward(x_small, params)
    assert out_small.shape == (8, 1)
    assert jnp.allclose(out_small, ref_small, atol=1e-4, rtol=1e-4)

    # Ragged case: multi-step grid (Bp=250, tbp=128 -> grid=(2,)) with a
    # partial last block plus a 2-row B % pack remainder on the JAX path.
    x_big = jax.random.normal(k_x2, (1002, input_size), jnp.float32)
    out_big = jax.block_until_ready(
        hockeynet_forward(x_big, params, block_b=512))
    ref_big = reference_forward(x_big, params)
    assert out_big.shape == (1002, 1)
    assert jnp.allclose(out_big, ref_big, atol=1e-4, rtol=1e-4)

    print("KERNEL_OK")
</pallas_src>

<mosaic_0001>
module attributes {stable_mosaic.version = 11 : i64} {
  func.func @hockeynet_kernel(%arg0: i32, %arg1: memref<2x128xf32, #tpu.memory_space<vmem>>, %arg2: memref<128x256xf32, #tpu.memory_space<vmem>>, %arg3: memref<1x256xf32, #tpu.memory_space<vmem>>, %arg4: memref<256x128xf32, #tpu.memory_space<vmem>>, %arg5: memref<1x128xf32, #tpu.memory_space<vmem>>, %arg6: memref<128x4xf32, #tpu.memory_space<vmem>>, %arg7: memref<1x4xf32, #tpu.memory_space<vmem>>, %arg8: memref<2x4xf32, #tpu.memory_space<vmem>>) attributes {dimension_semantics = [#tpu.dimension_semantics<parallel>], iteration_bounds = array<i64: 1>, scalar_prefetch = 0 : i64, scratch_operands = 0 : i64, tpu.core_type = #tpu.core_type<tc>, window_params = [{transform_indices = @transform_0, window_bounds = array<i64: 2, 128>}, {pipeline_mode = #tpu.pipeline_mode<synchronous>, transform_indices = @transform_1, window_bounds = array<i64: 128, 256>}, {pipeline_mode = #tpu.pipeline_mode<synchronous>, transform_indices = @transform_2, window_bounds = array<i64: 1, 256>}, {pipeline_mode = #tpu.pipeline_mode<synchronous>, transform_indices = @transform_3, window_bounds = array<i64: 256, 128>}, {pipeline_mode = #tpu.pipeline_mode<synchronous>, transform_indices = @transform_4, window_bounds = array<i64: 1, 128>}, {pipeline_mode = #tpu.pipeline_mode<synchronous>, transform_indices = @transform_5, window_bounds = array<i64: 128, 4>}, {pipeline_mode = #tpu.pipeline_mode<synchronous>, transform_indices = @transform_6, window_bounds = array<i64: 1, 4>}, {transform_indices = @transform_7, window_bounds = array<i64: 2, 4>}]} {
    %c0 = arith.constant 0 : index
    %c0_0 = arith.constant 0 : index
    %0 = vector.load %arg1[%c0, %c0_0] : memref<2x128xf32, #tpu.memory_space<vmem>>, vector<2x128xf32>
    %c0_1 = arith.constant 0 : index
    %c0_2 = arith.constant 0 : index
    %1 = vector.load %arg2[%c0_1, %c0_2] : memref<128x256xf32, #tpu.memory_space<vmem>>, vector<128x256xf32>
    %cst = arith.constant dense<0.000000e+00> : vector<2x256xf32>
    %2 = tpu.matmul %0, %1, %cst {dimension_numbers = #tpu.dot_dimension_numbers<[1], [0], [0], [1], [0, 0, 1, 1], [], []>} : vector<2x128xf32>, vector<128x256xf32>, vector<2x256xf32> -> vector<2x256xf32>
    %c0_3 = arith.constant 0 : index
    %c0_4 = arith.constant 0 : index
    %3 = vector.load %arg3[%c0_3, %c0_4] : memref<1x256xf32, #tpu.memory_space<vmem>>, vector<1x256xf32>
    %4 = vector.broadcast %3 : vector<1x256xf32> to vector<2x256xf32>
    %5 = arith.addf %2, %4 : vector<2x256xf32>
    %cst_5 = arith.constant 0.000000e+00 : f32
    %6 = vector.broadcast %cst_5 : f32 to vector<2x256xf32>
    %7 = arith.maximumf %5, %6 : vector<2x256xf32>
    %c0_6 = arith.constant 0 : index
    %c0_7 = arith.constant 0 : index
    %8 = vector.load %arg4[%c0_6, %c0_7] : memref<256x128xf32, #tpu.memory_space<vmem>>, vector<256x128xf32>
    %cst_8 = arith.constant dense<0.000000e+00> : vector<2x128xf32>
    %9 = tpu.matmul %7, %8, %cst_8 {dimension_numbers = #tpu.dot_dimension_numbers<[1], [0], [0], [1], [0, 0, 1, 1], [], []>} : vector<2x256xf32>, vector<256x128xf32>, vector<2x128xf32> -> vector<2x128xf32>
    %c0_9 = arith.constant 0 : index
    %c0_10 = arith.constant 0 : index
    %10 = vector.load %arg5[%c0_9, %c0_10] : memref<1x128xf32, #tpu.memory_space<vmem>>, vector<1x128xf32>
    %11 = vector.broadcast %10 : vector<1x128xf32> to vector<2x128xf32>
    %12 = arith.addf %9, %11 : vector<2x128xf32>
    %cst_11 = arith.constant 0.000000e+00 : f32
    %13 = vector.broadcast %cst_11 : f32 to vector<2x128xf32>
    %14 = arith.maximumf %12, %13 : vector<2x128xf32>
    %c0_12 = arith.constant 0 : index
    %c0_13 = arith.constant 0 : index
    %15 = vector.load %arg6[%c0_12, %c0_13] : memref<128x4xf32, #tpu.memory_space<vmem>>, vector<128x4xf32>
    %cst_14 = arith.constant dense<0.000000e+00> : vector<2x4xf32>
    %16 = tpu.matmul %14, %15, %cst_14 {dimension_numbers = #tpu.dot_dimension_numbers<[1], [0], [0], [1], [0, 0, 1, 1], [], []>} : vector<2x128xf32>, vector<128x4xf32>, vector<2x4xf32> -> vector<2x4xf32>
    %c0_15 = arith.constant 0 : index
    %c0_16 = arith.constant 0 : index
    %17 = vector.load %arg7[%c0_15, %c0_16] : memref<1x4xf32, #tpu.memory_space<vmem>>, vector<1x4xf32>
    %18 = vector.broadcast %17 : vector<1x4xf32> to vector<2x4xf32>
    %19 = arith.addf %16, %18 : vector<2x4xf32>
    %c0_17 = arith.constant 0 : index
    %c0_18 = arith.constant 0 : index
    %20 = vector.load %arg8[%c0_17, %c0_18] : memref<2x4xf32, #tpu.memory_space<vmem>>, vector<2x4xf32>
    tpu.vector_store %arg8[%c0_17, %c0_18], %19 {strides = array<i32>} : memref<2x4xf32, #tpu.memory_space<vmem>>, vector<2x4xf32>,
    return
  }
  func.func @transform_0(%arg0: i32) -> (i32, i32) {
    %c0_i32 = arith.constant 0 : i32
    %c0_i32_0 = arith.constant 0 : i32
    return %arg0, %c0_i32 : i32, i32
  }
  func.func @transform_1(%arg0: i32) -> (i32, i32) {
    %c0_i32 = arith.constant 0 : i32
    %c0_i32_0 = arith.constant 0 : i32
    %c0_i32_1 = arith.constant 0 : i32
    return %c0_i32, %c0_i32_0 : i32, i32
  }
  func.func @transform_2(%arg0: i32) -> (i32, i32) {
    %c0_i32 = arith.constant 0 : i32
    %c0_i32_0 = arith.constant 0 : i32
    %c0_i32_1 = arith.constant 0 : i32
    return %c0_i32, %c0_i32_0 : i32, i32
  }
  func.func @transform_3(%arg0: i32) -> (i32, i32) {
    %c0_i32 = arith.constant 0 : i32
    %c0_i32_0 = arith.constant 0 : i32
    %c0_i32_1 = arith.constant 0 : i32
    return %c0_i32, %c0_i32_0 : i32, i32
  }
  func.func @transform_4(%arg0: i32) -> (i32, i32) {
    %c0_i32 = arith.constant 0 : i32
    %c0_i32_0 = arith.constant 0 : i32
    %c0_i32_1 = arith.constant 0 : i32
    return %c0_i32, %c0_i32_0 : i32, i32
  }
  func.func @transform_5(%arg0: i32) -> (i32, i32) {
    %c0_i32 = arith.constant 0 : i32
    %c0_i32_0 = arith.constant 0 : i32
    %c0_i32_1 = arith.constant 0 : i32
    return %c0_i32, %c0_i32_0 : i32, i32
  }
  func.func @transform_6(%arg0: i32) -> (i32, i32) {
    %c0_i32 = arith.constant 0 : i32
    %c0_i32_0 = arith.constant 0 : i32
    %c0_i32_1 = arith.constant 0 : i32
    return %c0_i32, %c0_i32_0 : i32, i32
  }
  func.func @transform_7(%arg0: i32) -> (i32, i32) {
    %c0_i32 = arith.constant 0 : i32
    %c0_i32_0 = arith.constant 0 : i32
    return %arg0, %c0_i32 : i32, i32
  }
}

</mosaic_0001>

<llo_original>
// kernel: tpu_custom_call.1
$region0: #{tpu_custom_call.1}
  #allocation0 [shape = 'u32[]', space=smem, size = 0x4, offset = 0x4, fixed_abs, tag = 'smem constant byte address 0x4 - core index']
  #allocation1 [shape = 'u32[144,128]{1,0:T(1,128)}', space=vmem, size = 0x12000, scoped, tag = 'internal scratch']
  %s0 = inlined_call_operand.vmem [shape: f32[2,128], index: 0, kind: input, shape index: {}]
  %s1 = inlined_call_operand.hbm [shape: f32[128,256], index: 1, kind: input, shape index: {}]
  %s2 = inlined_call_operand.vmem [shape: f32[1,256], index: 2, kind: input, shape index: {}]
  %s3 = inlined_call_operand.hbm [shape: f32[256,128], index: 3, kind: input, shape index: {}]
  %s4 = inlined_call_operand.vmem [shape: f32[1,128], index: 4, kind: input, shape index: {}]
  %s5 = inlined_call_operand.vmem [shape: f32[128,4], index: 5, kind: input, shape index: {}]
  %s6 = inlined_call_operand.vmem [shape: f32[1,4], index: 6, kind: input, shape index: {}]
  %s7 = inlined_call_operand.hbm [shape: f32[2,4], index: 7, kind: output, shape index: {}]
  %s8 = sld [smem:[#allocation0]]
  $region46: #{tpu_custom_call.1} parent=0
    _
  %s10 = ssub.s32 1, %s8
  %s11 = scalar_select 0, %s10, %s8
  $region1: #{tpu_custom_call.1} parent=0
    #allocation2 [shape = 'u8[131072]{0}', space=vmem, size = 0x20000, scoped, tag = 'input window, operand 1, single buffered']
    #allocation3 [shape = 's32[1]{0}', space=sflag, size = 0x4, scoped, tag = 'scoped memory for tpu_custom_call.1']
    #allocation4 [shape = 's32[1]{0}', space=sflag, size = 0x4, scoped, tag = 'scoped memory for tpu_custom_call.1']
    #allocation5 [shape = 'u8[131072]{0}', space=vmem, size = 0x20000, scoped, tag = 'input window, operand 3, single buffered']
    #allocation6 [shape = 's32[1]{0}', space=sflag, size = 0x4, scoped, tag = 'scoped memory for tpu_custom_call.1']
    #allocation7 [shape = 'u8[1024]{0}', space=vmem, size = 0x400, scoped, tag = 'output window, operand 0, single buffered']
    %12 = vsyncpa [#allocation3], 0
    %13 = vsyncpa [#allocation6], 0
    %14 = vsyncpa [#allocation4], 0
    // Predicated region
    $region2: #{tpu_custom_call.1} parent=1 // pred_check
      _
    $region3: #{tpu_custom_call.1} parent=1 // pred_check_branch
      %16 = sbr.rel (0) target = $region5
    $region4: #{tpu_custom_call.1} parent=1 // pred_region
      _
    $region5: #{tpu_custom_call.1} parent=1 // pred_fallthru
      _
    // Predicated region
    $region6: #{tpu_custom_call.1} parent=1 // pred_check
      _
    $region7: #{tpu_custom_call.1} parent=1 // pred_check_branch
      %18 = sbr.rel (0) target = $region9
    $region8: #{tpu_custom_call.1} parent=1 // pred_region
      %s20 = ssub.s32 4096, 4096
      %21 = vsyncadd [#allocation3], %s20
      %s22 = sshll.u32 [#allocation2], 4
      %s23 = int_to_ptr.vmem [resolvable:$true] %s22
      %28 = dma.hbm_to_vmem [thread:$0]  %s1, 4096, %s23, [#allocation3], 256, 256, 16
    $region9: #{tpu_custom_call.1} parent=1 // pred_fallthru
      _
    // Predicated region
    $region10: #{tpu_custom_call.1} parent=1 // pred_check
      _
    $region11: #{tpu_custom_call.1} parent=1 // pred_check_branch
      %30 = sbr.rel (0) target = $region13
    $region12: #{tpu_custom_call.1} parent=1 // pred_region
      _
    $region13: #{tpu_custom_call.1} parent=1 // pred_fallthru
      _
    // Predicated region
    $region14: #{tpu_custom_call.1} parent=1 // pred_check
      _
    $region15: #{tpu_custom_call.1} parent=1 // pred_check_branch
      %32 = sbr.rel (0) target = $region17
    $region16: #{tpu_custom_call.1} parent=1 // pred_region
      %s34 = ssub.s32 4096, 4096
      %35 = vsyncadd [#allocation6], %s34
      %s36 = sshll.u32 [#allocation5], 4
      %s37 = int_to_ptr.vmem [resolvable:$true] %s36
      %42 = dma.hbm_to_vmem [thread:$0]  %s3, 4096, %s37, [#allocation6], 128, 128, 8
    $region17: #{tpu_custom_call.1} parent=1 // pred_fallthru
      _
    // Predicated region
    $region18: #{tpu_custom_call.1} parent=1 // pred_check
      _
    $region19: #{tpu_custom_call.1} parent=1 // pred_check_branch
      %44 = sbr.rel (0) target = $region21
    $region20: #{tpu_custom_call.1} parent=1 // pred_region
      _
    $region21: #{tpu_custom_call.1} parent=1 // pred_fallthru
      _
    // Predicated region
    $region22: #{tpu_custom_call.1} parent=1 // pred_check
      _
    $region23: #{tpu_custom_call.1} parent=1 // pred_check_branch
      %46 = sbr.rel (0) target = $region25
    $region24: #{tpu_custom_call.1} parent=1 // pred_region
      _
    $region25: #{tpu_custom_call.1} parent=1 // pred_fallthru
      _
    // Predicated region
    $region26: #{tpu_custom_call.1} parent=1 // pred_check
      _
    $region27: #{tpu_custom_call.1} parent=1 // pred_check_branch
      %48 = sbr.rel (0) target = $region29
    $region28: #{tpu_custom_call.1} parent=1 // pred_region
      _
    $region29: #{tpu_custom_call.1} parent=1 // pred_fallthru
      _
    // Predicated region
    $region30: #{tpu_custom_call.1} parent=1 // pred_check
      _
    $region31: #{tpu_custom_call.1} parent=1 // pred_check_branch
      %50 = sbr.rel (0) target = $region33
    $region32: #{tpu_custom_call.1} parent=1 // pred_region
      %51 = dma.done [#allocation3], 4096
    $region33: #{tpu_custom_call.1} parent=1 // pred_fallthru
      _
    // Predicated region
    $region34: #{tpu_custom_call.1} parent=1 // pred_check
      _
    $region35: #{tpu_custom_call.1} parent=1 // pred_check_branch
      %53 = sbr.rel (0) target = $region37
    $region36: #{tpu_custom_call.1} parent=1 // pred_region
      %54 = dma.done [#allocation6], 4096
    $region37: #{tpu_custom_call.1} parent=1 // pred_fallthru
      _
    %v55 = vld [vmem:[%s0] sm:$0x3]
    %v56 = vld [vmem:[#allocation2] sm:$0xff]
    %v57 = vld [vmem:[#allocation2 + $0x8] sm:$0xff]
    %v58 = vld [vmem:[#allocation2 + $0x10] sm:$0xff]
    %v59 = vld [vmem:[#allocation2 + $0x18] sm:$0xff]
    %v60 = vld [vmem:[#allocation2 + $0x20] sm:$0xff]
    %v61 = vld [vmem:[#allocation2 + $0x28] sm:$0xff]
    %v62 = vld [vmem:[#allocation2 + $0x30] sm:$0xff]
    %v63 = vld [vmem:[#allocation2 + $0x38] sm:$0xff]
    %v64 = vld [vmem:[#allocation2 + $0x40] sm:$0xff]
    %v65 = vld [vmem:[#allocation2 + $0x48] sm:$0xff]
    %v66 = vld [vmem:[#allocation2 + $0x50] sm:$0xff]
    %v67 = vld [vmem:[#allocation2 + $0x58] sm:$0xff]
    %v68 = vld [vmem:[#allocation2 + $0x60] sm:$0xff]
    %v69 = vld [vmem:[#allocation2 + $0x68] sm:$0xff]
    %v70 = vld [vmem:[#allocation2 + $0x70] sm:$0xff]
    %v71 = vld [vmem:[#allocation2 + $0x78] sm:$0xff]
    %v72 = vld [vmem:[#allocation2 + $0x80] sm:$0xff]
    %v73 = vld [vmem:[#allocation2 + $0x88] sm:$0xff]
    %v74 = vld [vmem:[#allocation2 + $0x90] sm:$0xff]
    %v75 = vld [vmem:[#allocation2 + $0x98] sm:$0xff]
    %v76 = vld [vmem:[#allocation2 + $0xa0] sm:$0xff]
    %v77 = vld [vmem:[#allocation2 + $0xa8] sm:$0xff]
    %v78 = vld [vmem:[#allocation2 + $0xb0] sm:$0xff]
    %v79 = vld [vmem:[#allocation2 + $0xb8] sm:$0xff]
    %v80 = vld [vmem:[#allocation2 + $0xc0] sm:$0xff]
    %v81 = vld [vmem:[#allocation2 + $0xc8] sm:$0xff]
    %v82 = vld [vmem:[#allocation2 + $0xd0] sm:$0xff]
    %v83 = vld [vmem:[#allocation2 + $0xd8] sm:$0xff]
    %v84 = vld [vmem:[#allocation2 + $0xe0] sm:$0xff]
    %v85 = vld [vmem:[#allocation2 + $0xe8] sm:$0xff]
    %v86 = vld [vmem:[#allocation2 + $0xf0] sm:$0xff]
    %v87 = vld [vmem:[#allocation2 + $0xf8] sm:$0xff]
    %v88 = vld [vmem:[%s2] sm:$0x3]
    %v90 = vlaneseq
    %v91 = vshrl.u32 %v90, 7
    %v92 = vsub.s32 0, %v91
    %v93 = vrot.slane %v88, %v92
    %v94 = vlaneseq
    %v95 = vshrl.u32 %v94, 7
    %v96 = vsub.s32 1, %v95
    %v97 = vrot.slane %v88, %v96
    %100 = vmatprep.subr.mxu0 %v87
    %101 = vmatpush1.msra.mxu0 %v86
    %102 = vmatprep.subr.mxu0 %v85
    %103 = vmatpush1.msra.mxu0 %v84
    %104 = vmatprep.subr.mxu0 %v83
    %105 = vmatpush1.msra.mxu0 %v82
    %106 = vmatprep.subr.mxu0 %v81
    %107 = vmatpush1.msra.mxu0 %v80
    %108 = vmatprep.subr.mxu0 %v79
    %109 = vmatpush1.msra.mxu0 %v78
    %110 = vmatprep.subr.mxu0 %v77
    %111 = vmatpush1.msra.mxu0 %v76
    %112 = vmatprep.subr.mxu0 %v75
    %113 = vmatpush1.msra.mxu0 %v74
    %114 = vmatprep.subr.mxu0 %v73
    %115 = vmatpush1.msra.mxu0 %v72
    %116 = vmatprep.subr.mxu0 %v71
    %117 = vmatpush1.msra.mxu0 %v70
    %118 = vmatprep.subr.mxu0 %v69
    %119 = vmatpush1.msra.mxu0 %v68
    %120 = vmatprep.subr.mxu0 %v67
    %121 = vmatpush1.msra.mxu0 %v66
    %122 = vmatprep.subr.mxu0 %v65
    %123 = vmatpush1.msra.mxu0 %v64
    %124 = vmatprep.subr.mxu0 %v63
    %125 = vmatpush1.msra.mxu0 %v62
    %126 = vmatprep.subr.mxu0 %v61
    %127 = vmatpush1.msra.mxu0 %v60
    %128 = vmatprep.subr.mxu0 %v59
    %129 = vmatpush1.msra.mxu0 %v58
    %130 = vmatprep.subr.mxu0 %v57
    %131 = vmatpush1.msra.mxu0 %v56
    %132 = vmatprep.subr.mxu0 0.0
    %133 = vmatpush2.msra.mxu0 0.0
    %134 = vmatprep.subr.mxu0 0.0
    %135 = vmatpush2.msra.mxu0 0.0
    %136 = vmatprep.subr.mxu0 0.0
    %137 = vmatpush2.msra.mxu0 0.0
    %138 = vmatprep.subr.mxu0 0.0
    %139 = vmatpush2.msra.mxu0 0.0
    %140 = vmatprep.subr.mxu0 0.0
    %141 = vmatpush2.msra.mxu0 0.0
    %142 = vmatprep.subr.mxu0 0.0
    %143 = vmatpush2.msra.mxu0 0.0
    %144 = vmatprep.subr.mxu0 0.0
    %145 = vmatpush2.msra.mxu0 0.0
    %146 = vmatprep.subr.mxu0 0.0
    %147 = vmatpush2.msra.mxu0 0.0
    %148 = vmatprep.subr.mxu0 0.0
    %149 = vmatpush2.msra.mxu0 0.0
    %150 = vmatprep.subr.mxu0 0.0
    %151 = vmatpush2.msra.mxu0 0.0
    %152 = vmatprep.subr.mxu0 0.0
    %153 = vmatpush2.msra.mxu0 0.0
    %154 = vmatprep.subr.mxu0 0.0
    %155 = vmatpush2.msra.mxu0 0.0
    %156 = vmatprep.subr.mxu0 0.0
    %157 = vmatpush2.msra.mxu0 0.0
    %158 = vmatprep.subr.mxu0 0.0
    %159 = vmatpush2.msra.mxu0 0.0
    %160 = vmatprep.subr.mxu0 0.0
    %161 = vmatpush2.msra.mxu0 0.0
    %162 = vmatprep.subr.mxu0 0.0
    %163 = vmatpush2.msra.mxu0 0.0
    %164 = vmatprep.mubr.f32.mxu0 0.0
    %165 = vmatmul.mubr.f32.gmra.mxu0 %v55
    %v166 = vpop.f32.mrf.mxu0
    %v167 = vadd.f32 %v93, %v166
    %v168 = vpop.f32.mrf.mxu0
    %v169 = vadd.f32 %v97, %v168
    %170 = vdwg.mxu0
    %v171 = vmax.f32 %v167, 0.0
    %v172 = vmax.f32 %v169, 0.0
    %v173 = vld [vmem:[#allocation5] sm:$0xff]
    %v174 = vld [vmem:[#allocation5 + $0x8] sm:$0xff]
    %v175 = vld [vmem:[#allocation5 + $0x10] sm:$0xff]
    %v176 = vld [vmem:[#allocation5 + $0x18] sm:$0xff]
    %v177 = vld [vmem:[#allocation5 + $0x20] sm:$0xff]
    %v178 = vld [vmem:[#allocation5 + $0x28] sm:$0xff]
    %v179 = vld [vmem:[#allocation5 + $0x30] sm:$0xff]
    %v180 = vld [vmem:[#allocation5 + $0x38] sm:$0xff]
    %v181 = vld [vmem:[#allocation5 + $0x40] sm:$0xff]
    %v182 = vld [vmem:[#allocation5 + $0x48] sm:$0xff]
    %v183 = vld [vmem:[#allocation5 + $0x50] sm:$0xff]
    %v184 = vld [vmem:[#allocation5 + $0x58] sm:$0xff]
    %v185 = vld [vmem:[#allocation5 + $0x60] sm:$0xff]
    %v186 = vld [vmem:[#allocation5 + $0x68] sm:$0xff]
    %v187 = vld [vmem:[#allocation5 + $0x70] sm:$0xff]
    %v188 = vld [vmem:[#allocation5 + $0x78] sm:$0xff]
    %v189 = vld [vmem:[#allocation5 + $0x80] sm:$0xff]
    %v190 = vld [vmem:[#allocation5 + $0x88] sm:$0xff]
    %v191 = vld [vmem:[#allocation5 + $0x90] sm:$0xff]
    %v192 = vld [vmem:[#allocation5 + $0x98] sm:$0xff]
    %v193 = vld [vmem:[#allocation5 + $0xa0] sm:$0xff]
    %v194 = vld [vmem:[#allocation5 + $0xa8] sm:$0xff]
    %v195 = vld [vmem:[#allocation5 + $0xb0] sm:$0xff]
    %v196 = vld [vmem:[#allocation5 + $0xb8] sm:$0xff]
    %v197 = vld [vmem:[#allocation5 + $0xc0] sm:$0xff]
    %v198 = vld [vmem:[#allocation5 + $0xc8] sm:$0xff]
    %v199 = vld [vmem:[#allocation5 + $0xd0] sm:$0xff]
    %v200 = vld [vmem:[#allocation5 + $0xd8] sm:$0xff]
    %v201 = vld [vmem:[#allocation5 + $0xe0] sm:$0xff]
    %v202 = vld [vmem:[#allocation5 + $0xe8] sm:$0xff]
    %v203 = vld [vmem:[#allocation5 + $0xf0] sm:$0xff]
    %v204 = vld [vmem:[#allocation5 + $0xf8] sm:$0xff]
    %v205 = vld [vmem:[%s4] sm:$0x1]
    %v207 = vlaneseq
    %v208 = vshrl.u32 %v207, 7
    %v209 = vsub.s32 0, %v208
    %v210 = vrot.slane %v205, %v209
    %212 = vmatprep.subr.mxu0 0.0
    %213 = vmatpush1.msra.mxu0 %v188
    %214 = vmatprep.subr.mxu0 0.0
    %215 = vmatpush1.msra.mxu0 %v187
    %216 = vmatprep.subr.mxu0 0.0
    %217 = vmatpush1.msra.mxu0 %v186
    %218 = vmatprep.subr.mxu0 0.0
    %219 = vmatpush1.msra.mxu0 %v185
    %220 = vmatprep.subr.mxu0 0.0
    %221 = vmatpush1.msra.mxu0 %v184
    %222 = vmatprep.subr.mxu0 0.0
    %223 = vmatpush1.msra.mxu0 %v183
    %224 = vmatprep.subr.mxu0 0.0
    %225 = vmatpush1.msra.mxu0 %v182
    %226 = vmatprep.subr.mxu0 0.0
    %227 = vmatpush1.msra.mxu0 %v181
    %228 = vmatprep.subr.mxu0 0.0
    %229 = vmatpush1.msra.mxu0 %v180
    %230 = vmatprep.subr.mxu0 0.0
    %231 = vmatpush1.msra.mxu0 %v179
    %232 = vmatprep.subr.mxu0 0.0
    %233 = vmatpush1.msra.mxu0 %v178
    %234 = vmatprep.subr.mxu0 0.0
    %235 = vmatpush1.msra.mxu0 %v177
    %236 = vmatprep.subr.mxu0 0.0
    %237 = vmatpush1.msra.mxu0 %v176
    %238 = vmatprep.subr.mxu0 0.0
    %239 = vmatpush1.msra.mxu0 %v175
    %240 = vmatprep.subr.mxu0 0.0
    %241 = vmatpush1.msra.mxu0 %v174
    %242 = vmatprep.subr.mxu0 0.0
    %243 = vmatpush1.msra.mxu0 %v173
    %244 = vmatprep.subr.mxu0 0.0
    %245 = vmatpush2.msra.mxu0 %v204
    %246 = vmatprep.subr.mxu0 0.0
    %247 = vmatpush2.msra.mxu0 %v203
    %248 = vmatprep.subr.mxu0 0.0
    %249 = vmatpush2.msra.mxu0 %v202
    %250 = vmatprep.subr.mxu0 0.0
    %251 = vmatpush2.msra.mxu0 %v201
    %252 = vmatprep.subr.mxu0 0.0
    %253 = vmatpush2.msra.mxu0 %v200
    %254 = vmatprep.subr.mxu0 0.0
    %255 = vmatpush2.msra.mxu0 %v199
    %256 = vmatprep.subr.mxu0 0.0
    %257 = vmatpush2.msra.mxu0 %v198
    %258 = vmatprep.subr.mxu0 0.0
    %259 = vmatpush2.msra.mxu0 %v197
    %260 = vmatprep.subr.mxu0 0.0
    %261 = vmatpush2.msra.mxu0 %v196
    %262 = vmatprep.subr.mxu0 0.0
    %263 = vmatpush2.msra.mxu0 %v195
    %264 = vmatprep.subr.mxu0 0.0
    %265 = vmatpush2.msra.mxu0 %v194
    %266 = vmatprep.subr.mxu0 0.0
    %267 = vmatpush2.msra.mxu0 %v193
    %268 = vmatprep.subr.mxu0 0.0
    %269 = vmatpush2.msra.mxu0 %v192
    %270 = vmatprep.subr.mxu0 0.0
    %271 = vmatpush2.msra.mxu0 %v191
    %272 = vmatprep.subr.mxu0 0.0
    %273 = vmatpush2.msra.mxu0 %v190
    %274 = vmatprep.subr.mxu0 0.0
    %275 = vmatpush2.msra.mxu0 %v189
    %276 = vmatprep.mubr.f32.mxu0 %v172
    %277 = vmatmul.mubr.f32.gmra.mxu0 %v171
    %v278 = vpop.f32.mrf.mxu0
    %v279 = vadd.f32 %v210, %v278
    %v280 = vpop.f32.mrf.mxu0
    %281 = vdwg.mxu0
    %v282 = vmax.f32 %v279, 0.0
    %v283 = vld [vmem:[%s5] sm:$0xff]
    %v284 = vld [vmem:[%s5 + $0x8] sm:$0xff]
    %v285 = vld [vmem:[%s5 + $0x10] sm:$0xff]
    %v286 = vld [vmem:[%s5 + $0x18] sm:$0xff]
    %v287 = vld [vmem:[%s5 + $0x20] sm:$0xff]
    %v288 = vld [vmem:[%s5 + $0x28] sm:$0xff]
    %v289 = vld [vmem:[%s5 + $0x30] sm:$0xff]
    %v290 = vld [vmem:[%s5 + $0x38] sm:$0xff]
    %v291 = vld [vmem:[%s5 + $0x40] sm:$0xff]
    %v292 = vld [vmem:[%s5 + $0x48] sm:$0xff]
    %v293 = vld [vmem:[%s5 + $0x50] sm:$0xff]
    %v294 = vld [vmem:[%s5 + $0x58] sm:$0xff]
    %v295 = vld [vmem:[%s5 + $0x60] sm:$0xff]
    %v296 = vld [vmem:[%s5 + $0x68] sm:$0xff]
    %v297 = vld [vmem:[%s5 + $0x70] sm:$0xff]
    %v298 = vld [vmem:[%s5 + $0x78] sm:$0xff]
    %v299 = vld [vmem:[%s6] sm:$0x1]
    %v301 = vlaneseq
    %v302 = vshrl.u32 %v301, 7
    %v303 = vsub.s32 0, %v302
    %v304 = vrot.slane %v299, %v303
    %306 = vmatprep.subr.mxu0 0.0
    %307 = vmatpush1.msra.mxu0 %v298
    %308 = vmatprep.subr.mxu0 0.0
    %309 = vmatpush1.msra.mxu0 %v297
    %310 = vmatprep.subr.mxu0 0.0
    %311 = vmatpush1.msra.mxu0 %v296
    %312 = vmatprep.subr.mxu0 0.0
    %313 = vmatpush1.msra.mxu0 %v295
    %314 = vmatprep.subr.mxu0 0.0
    %315 = vmatpush1.msra.mxu0 %v294
    %316 = vmatprep.subr.mxu0 0.0
    %317 = vmatpush1.msra.mxu0 %v293
    %318 = vmatprep.subr.mxu0 0.0
    %319 = vmatpush1.msra.mxu0 %v292
    %320 = vmatprep.subr.mxu0 0.0
    %321 = vmatpush1.msra.mxu0 %v291
    %322 = vmatprep.subr.mxu0 0.0
    %323 = vmatpush1.msra.mxu0 %v290
    %324 = vmatprep.subr.mxu0 0.0
    %325 = vmatpush1.msra.mxu0 %v289
    %326 = vmatprep.subr.mxu0 0.0
    %327 = vmatpush1.msra.mxu0 %v288
    %328 = vmatprep.subr.mxu0 0.0
    %329 = vmatpush1.msra.mxu0 %v287
    %330 = vmatprep.subr.mxu0 0.0
    %331 = vmatpush1.msra.mxu0 %v286
    %332 = vmatprep.subr.mxu0 0.0
    %333 = vmatpush1.msra.mxu0 %v285
    %334 = vmatprep.subr.mxu0 0.0
    %335 = vmatpush1.msra.mxu0 %v284
    %336 = vmatprep.subr.mxu0 0.0
    %337 = vmatpush1.msra.mxu0 %v283
    %338 = vmatprep.subr.mxu0 0.0
    %339 = vmatpush2.msra.mxu0 0.0
    %340 = vmatprep.subr.mxu0 0.0
    %341 = vmatpush2.msra.mxu0 0.0
    %342 = vmatprep.subr.mxu0 0.0
    %343 = vmatpush2.msra.mxu0 0.0
    %344 = vmatprep.subr.mxu0 0.0
    %345 = vmatpush2.msra.mxu0 0.0
    %346 = vmatprep.subr.mxu0 0.0
    %347 = vmatpush2.msra.mxu0 0.0
    %348 = vmatprep.subr.mxu0 0.0
    %349 = vmatpush2.msra.mxu0 0.0
    %350 = vmatprep.subr.mxu0 0.0
    %351 = vmatpush2.msra.mxu0 0.0
    %352 = vmatprep.subr.mxu0 0.0
    %353 = vmatpush2.msra.mxu0 0.0
    %354 = vmatprep.subr.mxu0 0.0
    %355 = vmatpush2.msra.mxu0 0.0
    %356 = vmatprep.subr.mxu0 0.0
    %357 = vmatpush2.msra.mxu0 0.0
    %358 = vmatprep.subr.mxu0 0.0
    %359 = vmatpush2.msra.mxu0 0.0
    %360 = vmatprep.subr.mxu0 0.0
    %361 = vmatpush2.msra.mxu0 0.0
    %362 = vmatprep.subr.mxu0 0.0
    %363 = vmatpush2.msra.mxu0 0.0
    %364 = vmatprep.subr.mxu0 0.0
    %365 = vmatpush2.msra.mxu0 0.0
    %366 = vmatprep.subr.mxu0 0.0
    %367 = vmatpush2.msra.mxu0 0.0
    %368 = vmatprep.subr.mxu0 0.0
    %369 = vmatpush2.msra.mxu0 0.0
    %370 = vmatprep.mubr.f32.mxu0 0.0
    %371 = vmatmul.mubr.f32.gmra.mxu0 %v282
    %v372 = vpop.f32.mrf.mxu0
    %v373 = vadd.f32 %v304, %v372
    %v374 = vpop.f32.mrf.mxu0
    %375 = vdwg.mxu0
    %vm376 = vcmask 25600
    %377 = vst.msk [vmem:[#allocation7] sm:$0x3] %vm376, %v373
    // Predicated region
    $region38: #{tpu_custom_call.1} parent=1 // pred_check
      _
    $region39: #{tpu_custom_call.1} parent=1 // pred_check_branch
      %379 = sbr.rel (0) target = $region41
    $region40: #{tpu_custom_call.1} parent=1 // pred_region
      %s381 = ssub.s32 32, 32
      %382 = vsyncadd [#allocation4], %s381
      %s384 = sshll.u32 [#allocation7], 4
      %s385 = int_to_ptr.vmem [resolvable:$true] %s384
      %387 = dma.vmem_to_hbm [thread:$0]  %s385, 32, %s7, [#allocation4]
    $region41: #{tpu_custom_call.1} parent=1 // pred_fallthru
      _
    // Predicated region
    $region42: #{tpu_custom_call.1} parent=1 // pred_check
      _
    $region43: #{tpu_custom_call.1} parent=1 // pred_check_branch
      %389 = sbr.rel (0) target = $region45
    $region44: #{tpu_custom_call.1} parent=1 // pred_region
      %390 = dma.done [#allocation4], 32
    $region45: #{tpu_custom_call.1} parent=1 // pred_fallthru
      _
    %391 = vsyncpa [#allocation3], 1
    %392 = vsyncpa [#allocation6], 1
    %393 = vsyncpa [#allocation4], 1

</llo_original>
